<compile_context>
chip_gen: v6e
topology: v6e:2x2x1
jax: 0.10.0
libtpu: 0.0.40
codegen_flags: <defaults>
</compile_context>

<pallas_src>
import jax
import jax.numpy as jnp
from jax import lax
from jax.experimental import pallas as pl
from jax.experimental.pallas import tpu as pltpu


def _make_kernel(S, TS, guard_seq_oob):
    def kernel(h_ref, m_ref, o_ref, acc_emb, acc_msk):
        # h_ref:   (TB, TS, H) hidden-state tile
        # m_ref:   (TB, TS)    attention-mask tile (lane-dense, hidden dtype)
        # o_ref:   (TB, H)     output tile (same block across the seq axis)
        # acc_emb: (TB, H) f32 accumulator, acc_msk: (TB, 1) f32 accumulator
        si = pl.program_id(1)

        @pl.when(si == 0)
        def _init():
            acc_emb[...] = jnp.zeros_like(acc_emb)
            acc_msk[...] = jnp.zeros_like(acc_msk)

        h = h_ref[...]                      # (TB, TS, H)
        m = m_ref[...]                      # (TB, TS)

        if guard_seq_oob:
            # The final sequence tile extends past S; its VMEM contents beyond
            # S are stale garbage (possibly NaN/Inf).  Select (not multiply —
            # 0 * NaN = NaN) those positions to exact zero so they cannot
            # contaminate the sums.  Emitted only when S % TS != 0.
            pos = si * TS + lax.broadcasted_iota(jnp.int32, m.shape, 1)
            valid = pos < S                                  # (TB, TS) bool
            m = jnp.where(valid, m, jnp.zeros_like(m))
            h = jnp.where(valid[:, :, None], h, jnp.zeros_like(h))

        # Masked partial sum over this sequence tile on the MXU:
        # (TB, 1, TS) @ (TB, TS, H) -> (TB, 1, H), accumulated in f32.
        partial = jnp.einsum(
            "bqs,bsh->bqh", m[:, None, :], h,
            preferred_element_type=jnp.float32,
        )[:, 0, :]                          # (TB, H) f32
        acc_emb[...] += partial
        acc_msk[...] += jnp.sum(m.astype(jnp.float32), axis=1, keepdims=True)

        @pl.when(si == pl.num_programs(1) - 1)
        def _finalize():
            denom = jnp.maximum(acc_msk[...], 1e-9)          # (TB, 1)
            o_ref[...] = (acc_emb[...] / denom).astype(o_ref.dtype)

    return kernel


def mean_pooling(last_hidden_state, attention_mask, *,
                 batch_block=None, seq_block=None):
    """Masked mean pooling over axis 1 (sequence), matching the PyTorch module."""
    B, S, H = last_hidden_state.shape
    dtype = last_hidden_state.dtype
    dsize = jnp.dtype(dtype).itemsize

    mask = attention_mask.astype(dtype)     # keep it 2-D [B, S]

    # Batch tile: one packed-sublane group (8 for 32-bit, 16 for 16-bit, ...)
    # or the full batch when it is smaller.  A partial last batch block is
    # fine: Pallas drops out-of-bounds writes.
    sub = 8 * max(1, 4 // dsize)
    if batch_block is not None:
        TB = batch_block
    else:
        TB = sub if B >= sub else B

    # Sequence tile: full S if it fits the VMEM budget, otherwise the largest
    # multiple of 128 whose hidden-state block stays <= ~8 MiB.
    budget = 8 << 20
    row_bytes = max(1, TB * H * dsize)
    if seq_block is not None:
        TS = seq_block
    else:
        TS = S if S * row_bytes <= budget else max(
            128, (budget // row_bytes) // 128 * 128)
    if TS < S:
        TS = max(128, (TS // 128) * 128)    # lane constraint when actually tiling
    else:
        TS = S

    grid = (pl.cdiv(B, TB), pl.cdiv(S, TS))
    guard_seq_oob = (S % TS) != 0

    kernel = _make_kernel(S, TS, guard_seq_oob)

    out = pl.pallas_call(
        kernel,
        out_shape=jax.ShapeDtypeStruct((B, H), dtype),
        grid_spec=pltpu.PrefetchScalarGridSpec(
            num_scalar_prefetch=0,
            grid=grid,
            in_specs=[
                pl.BlockSpec((TB, TS, H), lambda bi, si: (bi, si, 0)),
                pl.BlockSpec((TB, TS), lambda bi, si: (bi, si)),
            ],
            out_specs=pl.BlockSpec((TB, H), lambda bi, si: (bi, 0)),
            scratch_shapes=[
                pltpu.VMEM((TB, H), jnp.float32),
                pltpu.VMEM((TB, 1), jnp.float32),
            ],
        ),
        compiler_params=pltpu.CompilerParams(
            dimension_semantics=("parallel", "arbitrary"),
            vmem_limit_bytes=32 << 20,
        ),
        cost_estimate=pl.CostEstimate(
            flops=2 * B * S * H,
            transcendentals=0,
            bytes_accessed=B * S * H * dsize + B * S * dsize + B * H * dsize,
        ),
    )(last_hidden_state, mask)

    return out


def _reference(last_hidden_state, attention_mask):
    m = attention_mask[..., None].astype(jnp.float32)
    h = last_hidden_state.astype(jnp.float32)
    sum_emb = jnp.sum(h * m, axis=1)
    sum_mask = jnp.maximum(jnp.sum(m, axis=1), 1e-9)
    return sum_emb / sum_mask


if __name__ == "__main__":
    key = jax.random.PRNGKey(0)
    k1, k2, k3, k4 = jax.random.split(key, 4)

    # 1) Small canonical shape (single block, no remainders).
    B, S, H = 2, 8, 32
    hid = jax.random.normal(k1, (B, S, H), dtype=jnp.float32)
    msk = (jax.random.uniform(k2, (B, S)) > 0.3).astype(jnp.float32)
    out = mean_pooling(hid, msk)
    jax.block_until_ready(out)
    ref = _reference(hid, msk)
    assert out.shape == (B, H)
    assert jnp.allclose(out, ref, atol=1e-5, rtol=1e-5), "mismatch vs reference"

    # 2) Clamp path (a fully masked-out row).
    msk0 = msk.at[1].set(0.0)
    out0 = mean_pooling(hid, msk0)
    jax.block_until_ready(out0)
    ref0 = _reference(hid, msk0)
    assert jnp.allclose(out0, ref0, atol=1e-5, rtol=1e-5), "mismatch (clamp path)"

    # 3) Non-divisible batch & sequence tiles (exercises the OOB guards).
    B2, S2, H2 = 10, 200, 32
    hid2 = jax.random.normal(k3, (B2, S2, H2), dtype=jnp.float32)
    msk2 = (jax.random.uniform(k4, (B2, S2)) > 0.3).astype(jnp.float32)
    out2 = mean_pooling(hid2, msk2, batch_block=8, seq_block=128)
    jax.block_until_ready(out2)
    ref2 = _reference(hid2, msk2)
    assert out2.shape == (B2, H2)
    assert jnp.allclose(out2, ref2, atol=1e-5, rtol=1e-5), "mismatch (remainder path)"

    # 4) bf16 hidden state (MXU-native path), remainder sequence tile.
    hid3 = hid2.astype(jnp.bfloat16)
    out3 = mean_pooling(hid3, msk2, seq_block=128)
    jax.block_until_ready(out3)
    ref3 = _reference(hid3, msk2)
    assert jnp.allclose(out3.astype(jnp.float32), ref3, atol=2e-2, rtol=2e-2), \
        "mismatch (bf16 path)"

    print("KERNEL_OK")
</pallas_src>

<mosaic_0001>
module attributes {stable_mosaic.version = 11 : i64} {
  func.func @kernel(%arg0: i32, %arg1: i32, %arg2: memref<2x8x32xf32, #tpu.memory_space<vmem>>, %arg3: memref<2x8xf32, #tpu.memory_space<vmem>>, %arg4: memref<2x32xf32, #tpu.memory_space<vmem>>, %arg5: memref<2x32xf32, #tpu.memory_space<vmem>>, %arg6: memref<2x1xf32, #tpu.memory_space<vmem>>) attributes {dimension_semantics = [#tpu.dimension_semantics<parallel>, #tpu.dimension_semantics<arbitrary>], iteration_bounds = array<i64: 1, 1>, scalar_prefetch = 0 : i64, scratch_operands = 2 : i64, tpu.core_type = #tpu.core_type<tc>, window_params = [{transform_indices = @transform_0, window_bounds = array<i64: 2, 8, 32>}, {transform_indices = @transform_1, window_bounds = array<i64: 2, 8>}, {transform_indices = @transform_2, window_bounds = array<i64: 2, 32>}]} {
    %c0_i32 = arith.constant 0 : i32
    %0 = arith.cmpi eq, %arg1, %c0_i32 : i32
    %1 = arith.extui %0 : i1 to i32
    %c0_i32_0 = arith.constant 0 : i32
    %2 = arith.cmpi ne, %1, %c0_i32_0 : i32
    scf.if %2 {
      %cst_16 = arith.constant 0.000000e+00 : f32
      %19 = vector.broadcast %cst_16 : f32 to vector<2x32xf32>
      %c0_17 = arith.constant 0 : index
      %c0_18 = arith.constant 0 : index
      %20 = vector.load %arg5[%c0_17, %c0_18] : memref<2x32xf32, #tpu.memory_space<vmem>>, vector<2x32xf32>
      tpu.vector_store %arg5[%c0_17, %c0_18], %19 {strides = array<i32>} : memref<2x32xf32, #tpu.memory_space<vmem>>, vector<2x32xf32>,
      %cst_19 = arith.constant 0.000000e+00 : f32
      %21 = vector.broadcast %cst_19 : f32 to vector<2x1xf32>
      %c0_20 = arith.constant 0 : index
      %c0_21 = arith.constant 0 : index
      %22 = vector.load %arg6[%c0_20, %c0_21] : memref<2x1xf32, #tpu.memory_space<vmem>>, vector<2x1xf32>
      tpu.vector_store %arg6[%c0_20, %c0_21], %21 {strides = array<i32>} : memref<2x1xf32, #tpu.memory_space<vmem>>, vector<2x1xf32>,
    } else {
    }
    %c0 = arith.constant 0 : index
    %c0_1 = arith.constant 0 : index
    %c0_2 = arith.constant 0 : index
    %3 = vector.load %arg2[%c0, %c0_1, %c0_2] : memref<2x8x32xf32, #tpu.memory_space<vmem>>, vector<2x8x32xf32>
    %c0_3 = arith.constant 0 : index
    %c0_4 = arith.constant 0 : index
    %4 = vector.load %arg3[%c0_3, %c0_4] : memref<2x8xf32, #tpu.memory_space<vmem>>, vector<2x8xf32>
    %5 = vector.shape_cast %4 : vector<2x8xf32> to vector<2x1x8xf32>
    "tpu.trace_start"() <{level = 10 : i32, message = "bqs,bsh->bqh"}> : () -> ()
    %cst = arith.constant dense<0.000000e+00> : vector<2x1x32xf32>
    %6 = tpu.matmul %5, %3, %cst {dimension_numbers = #tpu.dot_dimension_numbers<[2], [1], [1], [2], [0, 0, 0, 1, 1, 2], [0], [0]>} : vector<2x1x8xf32>, vector<2x8x32xf32>, vector<2x1x32xf32> -> vector<2x1x32xf32>
    "tpu.trace_stop"() : () -> ()
    %7 = vector.shape_cast %6 : vector<2x1x32xf32> to vector<2x32xf32>
    %c0_5 = arith.constant 0 : index
    %c0_6 = arith.constant 0 : index
    %8 = vector.load %arg5[%c0_5, %c0_6] : memref<2x32xf32, #tpu.memory_space<vmem>>, vector<2x32xf32>
    %9 = arith.addf %8, %7 : vector<2x32xf32>
    %c0_7 = arith.constant 0 : index
    %c0_8 = arith.constant 0 : index
    %10 = vector.load %arg5[%c0_7, %c0_8] : memref<2x32xf32, #tpu.memory_space<vmem>>, vector<2x32xf32>
    tpu.vector_store %arg5[%c0_7, %c0_8], %9 {strides = array<i32>} : memref<2x32xf32, #tpu.memory_space<vmem>>, vector<2x32xf32>,
    %c0_9 = arith.constant 0 : index
    %c0_10 = arith.constant 0 : index
    %11 = vector.load %arg6[%c0_9, %c0_10] : memref<2x1xf32, #tpu.memory_space<vmem>>, vector<2x1xf32>
    %cst_11 = arith.constant dense<0.000000e+00> : vector<2xf32>
    %12 = vector.multi_reduction <add>, %4, %cst_11 [1] : vector<2x8xf32> to vector<2xf32>
    %13 = vector.shape_cast %12 : vector<2xf32> to vector<2x1xf32>
    %14 = arith.addf %11, %13 : vector<2x1xf32>
    %c0_12 = arith.constant 0 : index
    %c0_13 = arith.constant 0 : index
    %15 = vector.load %arg6[%c0_12, %c0_13] : memref<2x1xf32, #tpu.memory_space<vmem>>, vector<2x1xf32>
    tpu.vector_store %arg6[%c0_12, %c0_13], %14 {strides = array<i32>} : memref<2x1xf32, #tpu.memory_space<vmem>>, vector<2x1xf32>,
    %c0_i32_14 = arith.constant 0 : i32
    %16 = arith.cmpi eq, %arg1, %c0_i32_14 : i32
    %17 = arith.extui %16 : i1 to i32
    %c0_i32_15 = arith.constant 0 : i32
    %18 = arith.cmpi ne, %17, %c0_i32_15 : i32
    scf.if %18 {
      %c0_16 = arith.constant 0 : index
      %c0_17 = arith.constant 0 : index
      %19 = vector.load %arg6[%c0_16, %c0_17] : memref<2x1xf32, #tpu.memory_space<vmem>>, vector<2x1xf32>
      %cst_18 = arith.constant 9.99999971E-10 : f32
      %20 = vector.broadcast %cst_18 : f32 to vector<2x1xf32>
      %21 = arith.maximumf %19, %20 : vector<2x1xf32>
      %c0_19 = arith.constant 0 : index
      %c0_20 = arith.constant 0 : index
      %22 = vector.load %arg5[%c0_19, %c0_20] : memref<2x32xf32, #tpu.memory_space<vmem>>, vector<2x32xf32>
      %23 = vector.broadcast %21 : vector<2x1xf32> to vector<2x32xf32>
      %24 = arith.divf %22, %23 : vector<2x32xf32>
      %c0_21 = arith.constant 0 : index
      %c0_22 = arith.constant 0 : index
      %25 = vector.load %arg4[%c0_21, %c0_22] : memref<2x32xf32, #tpu.memory_space<vmem>>, vector<2x32xf32>
      tpu.vector_store %arg4[%c0_21, %c0_22], %24 {strides = array<i32>} : memref<2x32xf32, #tpu.memory_space<vmem>>, vector<2x32xf32>,
    } else {
    }
    return
  }
  func.func @transform_0(%arg0: i32, %arg1: i32) -> (i32, i32, i32) {
    %c0_i32 = arith.constant 0 : i32
    %c0_i32_0 = arith.constant 0 : i32
    return %arg0, %arg1, %c0_i32 : i32, i32, i32
  }
  func.func @transform_1(%arg0: i32, %arg1: i32) -> (i32, i32) {
    %c0_i32 = arith.constant 0 : i32
    return %arg0, %arg1 : i32, i32
  }
  func.func @transform_2(%arg0: i32, %arg1: i32) -> (i32, i32) {
    %c0_i32 = arith.constant 0 : i32
    %c0_i32_0 = arith.constant 0 : i32
    return %arg0, %c0_i32 : i32, i32
  }
}

</mosaic_0001>

<llo_original>
// kernel: tpu_custom_call.1
$region0: #{tpu_custom_call.1}
  #allocation0 [shape = 'u32[]', space=smem, size = 0x4, offset = 0x4, fixed_abs, tag = 'smem constant byte address 0x4 - core index']
  #allocation1 [shape = 'u32[144,128]{1,0:T(1,128)}', space=vmem, size = 0x12000, scoped, tag = 'internal scratch']
  #allocation2 [shape = 'f32[2,32]{1,0:T(2,128)}', space=vmem, size = 0x400, scoped, tag = 'scratch operand']
  #allocation3 [shape = 'f32[2,1]{1,0:T(2,128)}', space=vmem, size = 0x400, scoped, tag = 'scratch operand']
  %s0 = inlined_call_operand.hbm [shape: f32[2,8,32], index: 0, kind: input, shape index: {}]
  %s1 = inlined_call_operand.hbm [shape: f32[2,8], index: 1, kind: input, shape index: {}]
  %s2 = inlined_call_operand.hbm [shape: f32[2,32], index: 2, kind: output, shape index: {}]
  %s3 = sld [smem:[#allocation0]]
  $region34: #{tpu_custom_call.1} parent=0
    _
  %s5 = ssub.s32 1, %s3
  %s6 = scalar_select 0, %s5, %s3
  $region1: #{tpu_custom_call.1} parent=0
    #allocation4 [shape = 'u8[8192]{0}', space=vmem, size = 0x2000, scoped, tag = 'input window, operand 0, single buffered']
    #allocation5 [shape = 's32[1]{0}', space=sflag, size = 0x4, scoped, tag = 'scoped memory for tpu_custom_call.1']
    #allocation6 [shape = 's32[1]{0}', space=sflag, size = 0x4, scoped, tag = 'scoped memory for tpu_custom_call.1']
    #allocation7 [shape = 'u8[1024]{0}', space=vmem, size = 0x400, scoped, tag = 'input window, operand 1, single buffered']
    #allocation8 [shape = 's32[1]{0}', space=sflag, size = 0x4, scoped, tag = 'scoped memory for tpu_custom_call.1']
    #allocation9 [shape = 'u8[1024]{0}', space=vmem, size = 0x400, scoped, tag = 'output window, operand 0, single buffered']
    %7 = vsyncpa [#allocation5], 0
    %8 = vsyncpa [#allocation8], 0
    %9 = vsyncpa [#allocation6], 0
    // Predicated region
    $region2: #{tpu_custom_call.1} parent=1 // pred_check
      _
    $region3: #{tpu_custom_call.1} parent=1 // pred_check_branch
      %11 = sbr.rel (0) target = $region5
    $region4: #{tpu_custom_call.1} parent=1 // pred_region
      %s13 = ssub.s32 256, 256
      %14 = vsyncadd [#allocation5], %s13
      %s15 = sshll.u32 [#allocation4], 4
      %s16 = int_to_ptr.vmem [resolvable:$true] %s15
      %21 = dma.hbm_to_vmem [thread:$0]  %s0, 256, %s16, [#allocation5], 128, 128, 8
    $region5: #{tpu_custom_call.1} parent=1 // pred_fallthru
      _
    // Predicated region
    $region6: #{tpu_custom_call.1} parent=1 // pred_check
      _
    $region7: #{tpu_custom_call.1} parent=1 // pred_check_branch
      %23 = sbr.rel (0) target = $region9
    $region8: #{tpu_custom_call.1} parent=1 // pred_region
      %s25 = ssub.s32 32, 32
      %26 = vsyncadd [#allocation8], %s25
      %s28 = sshll.u32 [#allocation7], 4
      %s29 = int_to_ptr.vmem [resolvable:$true] %s28
      %31 = dma.hbm_to_vmem [thread:$0]  %s1, 32, %s29, [#allocation8]
    $region9: #{tpu_custom_call.1} parent=1 // pred_fallthru
      _
    // Predicated region
    $region10: #{tpu_custom_call.1} parent=1 // pred_check
      _
    $region11: #{tpu_custom_call.1} parent=1 // pred_check_branch
      %33 = sbr.rel (0) target = $region13
    $region12: #{tpu_custom_call.1} parent=1 // pred_region
      %34 = dma.done [#allocation5], 256
    $region13: #{tpu_custom_call.1} parent=1 // pred_fallthru
      _
    // Predicated region
    $region14: #{tpu_custom_call.1} parent=1 // pred_check
      _
    $region15: #{tpu_custom_call.1} parent=1 // pred_check_branch
      %36 = sbr.rel (0) target = $region17
    $region16: #{tpu_custom_call.1} parent=1 // pred_region
      %37 = dma.done [#allocation8], 32
    $region17: #{tpu_custom_call.1} parent=1 // pred_fallthru
      _
    %p38 = scmp.eq.s32.totalorder 0, 0
    // Predicated region
    $region18: #{tpu_custom_call.1} parent=1 // pred_check
      %p39 = pneg %p38
    $region19: #{tpu_custom_call.1} parent=1 // pred_check_branch
      %41 = sbr.rel (%p39) target = $region21
    $region20: #{tpu_custom_call.1} parent=1 // pred_region
      %vm42 = vcmask 254976
      %43 = vst.msk [vmem:[#allocation2] sm:$0x3] %vm42, 0.0
      %vm44 = vcmask 1024
      %45 = vst.msk [vmem:[#allocation3] sm:$0x3] %vm44, 0.0
    $region21: #{tpu_custom_call.1} parent=1 // pred_fallthru
      _
    %v46 = vld [vmem:[#allocation4] sm:$0xff]
    %v47 = vld [vmem:[#allocation4 + $0x8] sm:$0xff]
    %v48 = vld [vmem:[#allocation7] sm:$0x3]
    %v51 = vunpack.c.l.s4 1966171168
    %v52 = vunpack.c.0.s8 %v51
    %v53 = vlaneseq
    %v54 = vshrl.u32 %v53, 7
    %v55 = vsub.s32 %v52, %v54
    %v56 = vrot.slane %v48, %v55
    %v57 = vcombine.high %v56, %v56
    %v59 = vunpack.c.l.s4 1966171168
    %v60 = vunpack.c.0.s8 %v59
    %v61 = vlaneseq
    %v62 = vshrl.u32 %v61, 7
    %v63 = vsub.s32 %v60, %v62
    %v64 = vrot.slane %v56, %v63
    %v66 = vunpack.c.l.s4 1966171168
    %v67 = vunpack.c.0.s8 %v66
    %v68 = vlaneseq
    %v69 = vshrl.u32 %v68, 7
    %v70 = vsub.s32 %v67, %v69
    %v71 = vrot.slane %v57, %v70
    %vm72 = vcmask 64512
    %v73 = vsel %vm72, %v64, 0
    %75 = vmatprep.subr.mxu0 0.0
    %76 = vmatpush1.msra.mxu0 0.0
    %77 = vmatprep.subr.mxu0 0.0
    %78 = vmatpush1.msra.mxu0 0.0
    %79 = vmatprep.subr.mxu0 0.0
    %80 = vmatpush1.msra.mxu0 0.0
    %81 = vmatprep.subr.mxu0 0.0
    %82 = vmatpush1.msra.mxu0 0.0
    %83 = vmatprep.subr.mxu0 0.0
    %84 = vmatpush1.msra.mxu0 0.0
    %85 = vmatprep.subr.mxu0 0.0
    %86 = vmatpush1.msra.mxu0 0.0
    %87 = vmatprep.subr.mxu0 0.0
    %88 = vmatpush1.msra.mxu0 0.0
    %89 = vmatprep.subr.mxu0 0.0
    %90 = vmatpush1.msra.mxu0 0.0
    %91 = vmatprep.subr.mxu0 0.0
    %92 = vmatpush1.msra.mxu0 0.0
    %93 = vmatprep.subr.mxu0 0.0
    %94 = vmatpush1.msra.mxu0 0.0
    %95 = vmatprep.subr.mxu0 0.0
    %96 = vmatpush1.msra.mxu0 0.0
    %97 = vmatprep.subr.mxu0 0.0
    %98 = vmatpush1.msra.mxu0 0.0
    %99 = vmatprep.subr.mxu0 0.0
    %100 = vmatpush1.msra.mxu0 0.0
    %101 = vmatprep.subr.mxu0 0.0
    %102 = vmatpush1.msra.mxu0 0.0
    %103 = vmatprep.subr.mxu0 0.0
    %104 = vmatpush1.msra.mxu0 0.0
    %105 = vmatprep.subr.mxu0 0.0
    %106 = vmatpush1.msra.mxu0 %v46
    %107 = vmatprep.subr.mxu0 0.0
    %108 = vmatpush2.msra.mxu0 0.0
    %109 = vmatprep.subr.mxu0 0.0
    %110 = vmatpush2.msra.mxu0 0.0
    %111 = vmatprep.subr.mxu0 0.0
    %112 = vmatpush2.msra.mxu0 0.0
    %113 = vmatprep.subr.mxu0 0.0
    %114 = vmatpush2.msra.mxu0 0.0
    %115 = vmatprep.subr.mxu0 0.0
    %116 = vmatpush2.msra.mxu0 0.0
    %117 = vmatprep.subr.mxu0 0.0
    %118 = vmatpush2.msra.mxu0 0.0
    %119 = vmatprep.subr.mxu0 0.0
    %120 = vmatpush2.msra.mxu0 0.0
    %121 = vmatprep.subr.mxu0 0.0
    %122 = vmatpush2.msra.mxu0 0.0
    %123 = vmatprep.subr.mxu0 0.0
    %124 = vmatpush2.msra.mxu0 0.0
    %125 = vmatprep.subr.mxu0 0.0
    %126 = vmatpush2.msra.mxu0 0.0
    %127 = vmatprep.subr.mxu0 0.0
    %128 = vmatpush2.msra.mxu0 0.0
    %129 = vmatprep.subr.mxu0 0.0
    %130 = vmatpush2.msra.mxu0 0.0
    %131 = vmatprep.subr.mxu0 0.0
    %132 = vmatpush2.msra.mxu0 0.0
    %133 = vmatprep.subr.mxu0 0.0
    %134 = vmatpush2.msra.mxu0 0.0
    %135 = vmatprep.subr.mxu0 0.0
    %136 = vmatpush2.msra.mxu0 0.0
    %137 = vmatprep.subr.mxu0 0.0
    %138 = vmatpush2.msra.mxu0 0.0
    %139 = vmatprep.mubr.f32.mxu0 0.0
    %140 = vmatmul.mubr.f32.gmra.mxu0 %v73
    %v141 = vpop.f32.mrf.mxu0
    %v142 = vadd.f32 0.0, %v141
    %v143 = vpop.f32.mrf.mxu0
    %144 = vdwg.mxu0
    %v145 = vsel %vm72, %v71, 0
    %147 = vmatprep.subr.mxu0 0.0
    %148 = vmatpush1.msra.mxu0 0.0
    %149 = vmatprep.subr.mxu0 0.0
    %150 = vmatpush1.msra.mxu0 0.0
    %151 = vmatprep.subr.mxu0 0.0
    %152 = vmatpush1.msra.mxu0 0.0
    %153 = vmatprep.subr.mxu0 0.0
    %154 = vmatpush1.msra.mxu0 0.0
    %155 = vmatprep.subr.mxu0 0.0
    %156 = vmatpush1.msra.mxu0 0.0
    %157 = vmatprep.subr.mxu0 0.0
    %158 = vmatpush1.msra.mxu0 0.0
    %159 = vmatprep.subr.mxu0 0.0
    %160 = vmatpush1.msra.mxu0 0.0
    %161 = vmatprep.subr.mxu0 0.0
    %162 = vmatpush1.msra.mxu0 0.0
    %163 = vmatprep.subr.mxu0 0.0
    %164 = vmatpush1.msra.mxu0 0.0
    %165 = vmatprep.subr.mxu0 0.0
    %166 = vmatpush1.msra.mxu0 0.0
    %167 = vmatprep.subr.mxu0 0.0
    %168 = vmatpush1.msra.mxu0 0.0
    %169 = vmatprep.subr.mxu0 0.0
    %170 = vmatpush1.msra.mxu0 0.0
    %171 = vmatprep.subr.mxu0 0.0
    %172 = vmatpush1.msra.mxu0 0.0
    %173 = vmatprep.subr.mxu0 0.0
    %174 = vmatpush1.msra.mxu0 0.0
    %175 = vmatprep.subr.mxu0 0.0
    %176 = vmatpush1.msra.mxu0 0.0
    %177 = vmatprep.subr.mxu0 0.0
    %178 = vmatpush1.msra.mxu0 %v47
    %179 = vmatprep.subr.mxu0 0.0
    %180 = vmatpush2.msra.mxu0 0.0
    %181 = vmatprep.subr.mxu0 0.0
    %182 = vmatpush2.msra.mxu0 0.0
    %183 = vmatprep.subr.mxu0 0.0
    %184 = vmatpush2.msra.mxu0 0.0
    %185 = vmatprep.subr.mxu0 0.0
    %186 = vmatpush2.msra.mxu0 0.0
    %187 = vmatprep.subr.mxu0 0.0
    %188 = vmatpush2.msra.mxu0 0.0
    %189 = vmatprep.subr.mxu0 0.0
    %190 = vmatpush2.msra.mxu0 0.0
    %191 = vmatprep.subr.mxu0 0.0
    %192 = vmatpush2.msra.mxu0 0.0
    %193 = vmatprep.subr.mxu0 0.0
    %194 = vmatpush2.msra.mxu0 0.0
    %195 = vmatprep.subr.mxu0 0.0
    %196 = vmatpush2.msra.mxu0 0.0
    %197 = vmatprep.subr.mxu0 0.0
    %198 = vmatpush2.msra.mxu0 0.0
    %199 = vmatprep.subr.mxu0 0.0
    %200 = vmatpush2.msra.mxu0 0.0
    %201 = vmatprep.subr.mxu0 0.0
    %202 = vmatpush2.msra.mxu0 0.0
    %203 = vmatprep.subr.mxu0 0.0
    %204 = vmatpush2.msra.mxu0 0.0
    %205 = vmatprep.subr.mxu0 0.0
    %206 = vmatpush2.msra.mxu0 0.0
    %207 = vmatprep.subr.mxu0 0.0
    %208 = vmatpush2.msra.mxu0 0.0
    %209 = vmatprep.subr.mxu0 0.0
    %210 = vmatpush2.msra.mxu0 0.0
    %211 = vmatprep.mubr.f32.mxu0 0.0
    %212 = vmatmul.mubr.f32.gmra.mxu0 %v145
    %v213 = vpop.f32.mrf.mxu0
    %v214 = vadd.f32 0.0, %v213
    %v215 = vpop.f32.mrf.mxu0
    %216 = vdwg.mxu0
    %v217 = vld [vmem:[#allocation2] sm:$0x3]
    %v220 = vrot.slane %v214, 7
    %vm221 = vcmask 1041409
    %v222 = vsel %vm221, %v220, %v142
    %v224 = vadd.f32 %v217, %v222
    %vm225 = vcmask 254976
    %226 = vst.msk [vmem:[#allocation2] sm:$0x3] %vm225, %v224
    %v227 = vld [vmem:[#allocation3] sm:$0x3]
    %vm228 = vcmask 58368
    %v229 = vsel %vm228, %v48, 0.0
    %230 = vadd.xlane.f32.xlu0 %v229
    %v231 = vpop.xlane.xlu0 %230
    %v232 = vadd.f32 %v227, %v231
    %vm233 = vcmask 1024
    %234 = vst.msk [vmem:[#allocation3] sm:$0x3] %vm233, %v232
    // Predicated region
    $region22: #{tpu_custom_call.1} parent=1 // pred_check
      %p235 = pneg %p38
    $region23: #{tpu_custom_call.1} parent=1 // pred_check_branch
      %237 = sbr.rel (%p235) target = $region25
    $region24: #{tpu_custom_call.1} parent=1 // pred_region
      %v238 = vld [vmem:[#allocation3] sm:$0x3]
      %v239 = vmax.f32 %v238, 1e-09
      %v240 = vld [vmem:[#allocation2] sm:$0x3]
      %242 = vset.pattern.permute.xlu0 0
      %243 = vperm.xlu0 %242, %v239
      %v244 = vpop.permute.xlu0 %243
      %v246 = vrcp.pop %v244
      %v247 = vmul.f32 %v240, %v246
      %248 = vst.msk [vmem:[#allocation9] sm:$0x3] %vm225, %v247
    $region25: #{tpu_custom_call.1} parent=1 // pred_fallthru
      _
    // Predicated region
    $region26: #{tpu_custom_call.1} parent=1 // pred_check
      _
    $region27: #{tpu_custom_call.1} parent=1 // pred_check_branch
      %250 = sbr.rel (0) target = $region29
    $region28: #{tpu_custom_call.1} parent=1 // pred_region
      %s252 = ssub.s32 32, 32
      %253 = vsyncadd [#allocation6], %s252
      %s255 = sshll.u32 [#allocation9], 4
      %s256 = int_to_ptr.vmem [resolvable:$true] %s255
      %258 = dma.vmem_to_hbm [thread:$0]  %s256, 32, %s2, [#allocation6]
    $region29: #{tpu_custom_call.1} parent=1 // pred_fallthru
      _
    // Predicated region
    $region30: #{tpu_custom_call.1} parent=1 // pred_check
      _
    $region31: #{tpu_custom_call.1} parent=1 // pred_check_branch
      %260 = sbr.rel (0) target = $region33
    $region32: #{tpu_custom_call.1} parent=1 // pred_region
      %261 = dma.done [#allocation6], 32
    $region33: #{tpu_custom_call.1} parent=1 // pred_fallthru
      _
    %262 = vsyncpa [#allocation5], 1
    %263 = vsyncpa [#allocation8], 1
    %264 = vsyncpa [#allocation6], 1

</llo_original>
